<compile_context>
chip_gen: v5e
topology: v5e:2x2
jax: 0.10.0
libtpu: 0.0.40
codegen_flags: <defaults>
</compile_context>

<pallas_src>
import functools

import jax
import jax.numpy as jnp
from jax import lax
from jax.experimental import pallas as pl
from jax.experimental.pallas import tpu as pltpu

EPS = 1e-5
K = 3          # Conv1d kernel size (padding=1 -> "same" length)
LANE = 128     # TPU lane width
SUB = 8        # TPU sublane width


def _round_up(x, m):
    return (x + m - 1) // m * m


def _vmem_limit_bytes():
    """~75% of physical VMEM (96 MiB on 128 MiB parts, 48 MiB on v7x)."""
    try:
        cap = pltpu.get_tpu_info().vmem_capacity_bytes
    except Exception:
        cap = 128 * 1024 * 1024
    return int(cap) * 3 // 4


def _mosaic_params():
    return pltpu.CompilerParams(dimension_semantics=("parallel",),
                                vmem_limit_bytes=_vmem_limit_bytes())


def _use_per_tap(c_contract):
    """Per-tap dots (instead of deep im2col) on v5e when one tap already fills
    the 128x128 MXU.  Correct on any chip; only a perf choice."""
    if c_contract > 128:
        return False
    try:
        kind = jax.devices()[0].device_kind.lower()
    except Exception:
        return False
    return "v5" in kind


def _const_spec(shape):
    """BlockSpec for operands revisited identically every grid step
    (weights, BN scale/shift) -> single-buffered, no wasted VMEM copy."""
    index_map = lambda *_: (0,) * len(shape)
    try:
        return pl.BlockSpec(shape, index_map, pipeline_mode=pl.Buffered(1))
    except Exception:  # older JAX without pipeline_mode/Buffered
        return pl.BlockSpec(shape, index_map)


# --------------------------------------------------------------------------- #
# Kernels
# --------------------------------------------------------------------------- #
def _conv3_and_stats(h, w_ref, L, per_tap):
    """3-tap 'same' conv + single-pass BN statistics.

    h:     (LP, C) bfloat16; rows [0, L) hold the signal, rows [L, LP) are 0.
    w_ref: (3*C, Cout) bf16 ref; taps stacked on the contraction dim
           (tap order: left / center / right, i.e. x[l-1], x[l], x[l+1]).
    Returns the (LP, Cout) bf16 conv output (rows >= L exactly zero, so it can
    be stored as-is and reused as zero padding) and an (8, Cout) f32 block
    holding [sum; sum_of_squares; 0...] over the L real rows, computed from the
    bf16-rounded values that are stored (self-consistent normalization).
    """
    LP, C = h.shape
    zrow = jnp.zeros((1, C), h.dtype)
    h_l = jnp.concatenate([zrow, h[:LP - 1]], axis=0)   # x[l-1] (zero at l=0)
    h_r = jnp.concatenate([h[1:], zrow], axis=0)        # x[l+1] (zero at l=LP-1)

    if per_tap:
        y = (jnp.dot(h_l, w_ref[0:C, :], preferred_element_type=jnp.float32)
             + jnp.dot(h, w_ref[C:2 * C, :], preferred_element_type=jnp.float32)
             + jnp.dot(h_r, w_ref[2 * C:3 * C, :],
                       preferred_element_type=jnp.float32))
    else:
        hcat = jnp.concatenate([h_l, h, h_r], axis=-1)  # (LP, 3*C) bf16 im2col
        y = jnp.dot(hcat, w_ref[...], preferred_element_type=jnp.float32)

    rows = lax.broadcasted_iota(jnp.int32, (LP, 1), 0)
    y = jnp.where(rows < L, y, 0.0)                     # keep padding rows zero

    y_bf = y.astype(jnp.bfloat16)                       # what actually gets stored
    y32 = y_bf.astype(jnp.float32)
    s = jnp.sum(y32, axis=0, keepdims=True)             # (1, Cout)
    ss = jnp.sum(y32 * y32, axis=0, keepdims=True)      # (1, Cout)
    cout = y.shape[-1]
    stats = jnp.concatenate([s, ss, jnp.zeros((6, cout), jnp.float32)], axis=0)
    return y_bf, stats


def _conv1_kernel(x_ref, w_ref, y_ref, st_ref, *, L, per_tap):
    # conv1 (bias cancelled by BN) + partial batch statistics for this n.
    y_bf, stats = _conv3_and_stats(x_ref[0], w_ref, L, per_tap)
    y_ref[0] = y_bf
    st_ref[0] = stats


def _norm_conv2_kernel(y1_ref, sc_ref, sh_ref, w_ref, y2_ref, st_ref, *, L, per_tap):
    # fused BN1 scale/shift (f32) + ReLU, then conv2 + partial batch statistics.
    y1 = y1_ref[0]                                       # (LP, C) bf16
    h = jnp.maximum(y1 * sc_ref[...] + sh_ref[...], 0.0)  # promoted to f32
    rows = lax.broadcasted_iota(jnp.int32, (h.shape[0], 1), 0)
    h = jnp.where(rows < L, h, 0.0)                      # re-zero padding rows
    y_bf, stats = _conv3_and_stats(h.astype(jnp.bfloat16), w_ref, L, per_tap)
    y2_ref[0] = y_bf
    st_ref[0] = stats


# --------------------------------------------------------------------------- #
# pallas_call wrappers
# --------------------------------------------------------------------------- #
def _run_conv1(x, w, L, per_tap):
    N, LP, CIP = x.shape
    COP = w.shape[-1]
    return pl.pallas_call(
        functools.partial(_conv1_kernel, L=L, per_tap=per_tap),
        grid=(N,),
        in_specs=[
            pl.BlockSpec((1, LP, CIP), lambda n: (n, 0, 0)),
            _const_spec((K * CIP, COP)),
        ],
        out_specs=[
            pl.BlockSpec((1, LP, COP), lambda n: (n, 0, 0)),
            pl.BlockSpec((1, 8, COP), lambda n: (n, 0, 0)),
        ],
        out_shape=[
            jax.ShapeDtypeStruct((N, LP, COP), jnp.bfloat16),
            jax.ShapeDtypeStruct((N, 8, COP), jnp.float32),
        ],
        compiler_params=_mosaic_params(),
    )(x, w)


def _run_norm_conv2(y1, scale, shift, w, L, per_tap):
    N, LP, C = y1.shape
    COP = w.shape[-1]
    return pl.pallas_call(
        functools.partial(_norm_conv2_kernel, L=L, per_tap=per_tap),
        grid=(N,),
        in_specs=[
            pl.BlockSpec((1, LP, C), lambda n: (n, 0, 0)),
            _const_spec((1, C)),
            _const_spec((1, C)),
            _const_spec((K * C, COP)),
        ],
        out_specs=[
            pl.BlockSpec((1, LP, COP), lambda n: (n, 0, 0)),
            pl.BlockSpec((1, 8, COP), lambda n: (n, 0, 0)),
        ],
        out_shape=[
            jax.ShapeDtypeStruct((N, LP, COP), jnp.bfloat16),
            jax.ShapeDtypeStruct((N, 8, COP), jnp.float32),
        ],
        compiler_params=_mosaic_params(),
    )(y1, scale, shift, w)


def _finalize_stats(stats, gamma, beta, count):
    """Combine per-batch partial sums into fused BN scale/shift vectors (f32)."""
    s = jnp.sum(stats[:, 0, :], axis=0)                    # (C,)
    ss = jnp.sum(stats[:, 1, :], axis=0)
    mean = s / count
    # NOTE: single-pass E[y^2]-E[y]^2 (guarded); fine for post-conv activations
    # with modest |mean|/std; a two-pass reduction would cost another HBM pass.
    var = jnp.maximum(ss / count - mean * mean, 0.0)       # biased (training) var
    scale = gamma[0] * lax.rsqrt(var + EPS)
    shift = beta[0] - mean * scale
    return scale[None, :], shift[None, :]


# --------------------------------------------------------------------------- #
# Module forward
# --------------------------------------------------------------------------- #
def init_params(key, in_ch, out_ch):
    """PyTorch-default init: Conv1d U(-s, s) with s=1/sqrt(fan_in*K); BN g=1, b=0."""
    k1, k2, k3, k4 = jax.random.split(key, 4)
    s1 = 1.0 / (in_ch * K) ** 0.5
    s2 = 1.0 / (out_ch * K) ** 0.5
    return dict(
        # weights stored as (K, C_in, C_out): tap order = left / center / right
        w1=jax.random.uniform(k1, (K, in_ch, out_ch), jnp.float32, -s1, s1),
        b1=jax.random.uniform(k2, (1, out_ch), jnp.float32, -s1, s1),  # cancelled by BN
        g1=jnp.ones((1, out_ch), jnp.float32),
        be1=jnp.zeros((1, out_ch), jnp.float32),
        w2=jax.random.uniform(k3, (K, out_ch, out_ch), jnp.float32, -s2, s2),
        b2=jax.random.uniform(k4, (1, out_ch), jnp.float32, -s2, s2),  # cancelled by BN
        g2=jnp.ones((1, out_ch), jnp.float32),
        be2=jnp.zeros((1, out_ch), jnp.float32),
    )


def stdunet_block(x_ncl, params):
    """Forward pass of StdUnetBlock; x_ncl: (N, C_in, L) float32 (PyTorch NCL)."""
    N, Cin, L = x_ncl.shape
    Cout = params["w1"].shape[-1]
    CIP = _round_up(Cin, LANE)
    COP = _round_up(Cout, LANE)
    LP = _round_up(L, SUB)            # rows [0, L) hold data, [L, LP) are zero
    per_tap1 = _use_per_tap(CIP)
    per_tap2 = _use_per_tap(COP)

    # NCL -> NLC, pad channels to lane width and rows to the sublane multiple,
    # single bf16 cast (XLA fuses pad + cast + transpose into one HBM pass).
    x = jnp.transpose(x_ncl, (0, 2, 1))
    x = jnp.pad(x, ((0, 0), (0, LP - L), (0, CIP - Cin))).astype(jnp.bfloat16)

    # taps stacked on the contraction dim -> (3*C, Cout) im2col weights (bf16).
    w1 = jnp.pad(params["w1"], ((0, 0), (0, CIP - Cin), (0, COP - Cout)))
    w1 = w1.reshape(K * CIP, COP).astype(jnp.bfloat16)
    w2 = jnp.pad(params["w2"], ((0, 0), (0, COP - Cout), (0, COP - Cout)))
    w2 = w2.reshape(K * COP, COP).astype(jnp.bfloat16)
    g1 = jnp.pad(params["g1"], ((0, 0), (0, COP - Cout)))
    be1 = jnp.pad(params["be1"], ((0, 0), (0, COP - Cout)))
    g2 = jnp.pad(params["g2"], ((0, 0), (0, COP - Cout)))
    be2 = jnp.pad(params["be2"], ((0, 0), (0, COP - Cout)))
    # NOTE: conv biases b1/b2 are cancelled exactly by training-mode BatchNorm's
    # batch-mean subtraction, so they are not used (dead work removed).  If the
    # block is ever run in eval mode with running stats they must be re-added.

    count = N * L
    y1, st1 = _run_conv1(x, w1, L, per_tap1)                       # conv1 + stats
    scale1, shift1 = _finalize_stats(st1, g1, be1, count)
    y2, st2 = _run_norm_conv2(y1, scale1, shift1, w2, L, per_tap2)  # BN1+ReLU+conv2
    scale2, shift2 = _finalize_stats(st2, g2, be2, count)

    # Epilogue: BN2 affine + ReLU in plain JAX so XLA fuses it with the pad
    # slice and the NLC -> NCL transpose into one read of bf16 y2 + one write.
    y = y2[:, :L, :Cout].astype(jnp.float32)
    out = jnp.maximum(y * scale2[0, :Cout] + shift2[0, :Cout], 0.0)
    return jnp.transpose(out, (0, 2, 1))                           # NLC -> NCL


def stdunet_block_ref(x_ncl, params):
    """Pure-JAX reference with identical numerics (bf16 MXU operands and bf16
    inter-stage activations, f32 statistics / normalization)."""
    x = jnp.transpose(x_ncl, (0, 2, 1)).astype(jnp.bfloat16)       # (N, L, C)

    def conv_bn_relu(h_bf, w, g, be):
        n, l, c = h_bf.shape
        cout = w.shape[-1]
        hp = jnp.pad(h_bf, ((0, 0), (1, 1), (0, 0)))
        hcat = jnp.concatenate([hp[:, 0:l], hp[:, 1:l + 1], hp[:, 2:l + 2]], axis=-1)
        wcat = w.reshape(K * c, cout).astype(jnp.bfloat16)
        y = jnp.einsum("nlc,cd->nld", hcat, wcat,
                       preferred_element_type=jnp.float32)
        y = y.astype(jnp.bfloat16).astype(jnp.float32)   # bf16 intermediate storage
        cnt = n * l
        mean = jnp.sum(y, axis=(0, 1)) / cnt
        var = jnp.maximum(jnp.sum(y * y, axis=(0, 1)) / cnt - mean * mean, 0.0)
        scale = g[0] * lax.rsqrt(var + EPS)
        shift = be[0] - mean * scale
        return jnp.maximum(y * scale + shift, 0.0)

    y = conv_bn_relu(x, params["w1"], params["g1"], params["be1"])
    y = conv_bn_relu(y.astype(jnp.bfloat16), params["w2"], params["g2"], params["be2"])
    return jnp.transpose(y, (0, 2, 1))


if __name__ == "__main__":
    key = jax.random.PRNGKey(0)
    kx, kp = jax.random.split(key)

    N, C_IN, C_OUT, L = 2, 4, 8, 16
    x = jax.random.normal(kx, (N, C_IN, L), dtype=jnp.float32)
    params = init_params(kp, C_IN, C_OUT)

    fwd = jax.jit(stdunet_block)
    out = jax.block_until_ready(fwd(x, params))
    ref = jax.block_until_ready(stdunet_block_ref(x, params))

    assert out.shape == (N, C_OUT, L), out.shape
    assert bool(jnp.all(jnp.isfinite(out)))
    assert jnp.allclose(out, ref, atol=5e-3, rtol=5e-3), \
        float(jnp.max(jnp.abs(out - ref)))

    print("KERNEL_OK")
</pallas_src>

<mosaic_0001>
module attributes {stable_mosaic.version = 11 : i64} {
  func.func @_conv1_kernel(%arg0: i32, %arg1: memref<1x16x128xbf16, #tpu.memory_space<vmem>>, %arg2: memref<384x128xbf16, #tpu.memory_space<vmem>>, %arg3: memref<1x16x128xbf16, #tpu.memory_space<vmem>>, %arg4: memref<1x8x128xf32, #tpu.memory_space<vmem>>) attributes {dimension_semantics = [#tpu.dimension_semantics<parallel>], iteration_bounds = array<i64: 2>, scalar_prefetch = 0 : i64, scratch_operands = 0 : i64, tpu.core_type = #tpu.core_type<tc>, window_params = [{transform_indices = @transform_0, window_bounds = array<i64: 1, 16, 128>}, {pipeline_mode = #tpu.pipeline_mode<synchronous>, transform_indices = @transform_1, window_bounds = array<i64: 384, 128>}, {transform_indices = @transform_2, window_bounds = array<i64: 1, 16, 128>}, {transform_indices = @transform_3, window_bounds = array<i64: 1, 8, 128>}]} {
    %c0 = arith.constant 0 : index
    %c0_0 = arith.constant 0 : index
    %c0_1 = arith.constant 0 : index
    %0 = vector.load %arg1[%c0, %c0_0, %c0_1] : memref<1x16x128xbf16, #tpu.memory_space<vmem>>, vector<1x16x128xbf16>
    %1 = vector.shape_cast %0 : vector<1x16x128xbf16> to vector<16x128xbf16>
    %cst = arith.constant 0.000000e+00 : bf16
    %2 = vector.broadcast %cst : bf16 to vector<1x128xbf16>
    %3 = vector.extract_strided_slice %1 {offsets = [0, 0], sizes = [15, 128], strides = [1, 1]} : vector<16x128xbf16> to vector<15x128xbf16>
    %4 = tpu.concatenate %2, %3 in 0 : vector<1x128xbf16>, vector<15x128xbf16> -> vector<16x128xbf16>
    %5 = vector.extract_strided_slice %1 {offsets = [1, 0], sizes = [15, 128], strides = [1, 1]} : vector<16x128xbf16> to vector<15x128xbf16>
    %6 = tpu.concatenate %5, %2 in 0 : vector<15x128xbf16>, vector<1x128xbf16> -> vector<16x128xbf16>
    %7 = tpu.concatenate %4, %1, %6 in 1 : vector<16x128xbf16>, vector<16x128xbf16>, vector<16x128xbf16> -> vector<16x384xbf16>
    %c0_2 = arith.constant 0 : index
    %c0_3 = arith.constant 0 : index
    %8 = vector.load %arg2[%c0_2, %c0_3] : memref<384x128xbf16, #tpu.memory_space<vmem>>, vector<384x128xbf16>
    %cst_4 = arith.constant dense<0.000000e+00> : vector<16x128xf32>
    %9 = tpu.matmul %7, %8, %cst_4 {dimension_numbers = #tpu.dot_dimension_numbers<[1], [0], [0], [1], [0, 0, 1, 1], [], []>} : vector<16x384xbf16>, vector<384x128xbf16>, vector<16x128xf32> -> vector<16x128xf32>
    %10 = tpu.iota {dimensions = array<i32: 0>} : vector<16x1xi32>
    %c16_i32 = arith.constant 16 : i32
    %11 = vector.broadcast %c16_i32 : i32 to vector<16x1xi32>
    %12 = arith.cmpi slt, %10, %11 : vector<16x1xi32>
    %cst_5 = arith.constant 0.000000e+00 : f32
    %13 = vector.shape_cast %12 : vector<16x1xi1> to vector<16x1xi1>
    %14 = vector.broadcast %13 : vector<16x1xi1> to vector<16x128xi1>
    %15 = vector.broadcast %cst_5 : f32 to vector<16x128xf32>
    %16 = arith.select %14, %9, %15 : vector<16x128xi1>, vector<16x128xf32>
    %17 = arith.truncf %16 : vector<16x128xf32> to vector<16x128xbf16>
    %18 = arith.extf %17 : vector<16x128xbf16> to vector<16x128xf32>
    %cst_6 = arith.constant dense<0.000000e+00> : vector<128xf32>
    %19 = vector.multi_reduction <add>, %18, %cst_6 [0] : vector<16x128xf32> to vector<128xf32>
    %20 = vector.shape_cast %19 : vector<128xf32> to vector<1x128xf32>
    %21 = arith.mulf %18, %18 : vector<16x128xf32>
    %cst_7 = arith.constant dense<0.000000e+00> : vector<128xf32>
    %22 = vector.multi_reduction <add>, %21, %cst_7 [0] : vector<16x128xf32> to vector<128xf32>
    %23 = vector.shape_cast %22 : vector<128xf32> to vector<1x128xf32>
    %cst_8 = arith.constant 0.000000e+00 : f32
    %24 = vector.broadcast %cst_8 : f32 to vector<6x128xf32>
    %25 = tpu.concatenate %20, %23, %24 in 0 : vector<1x128xf32>, vector<1x128xf32>, vector<6x128xf32> -> vector<8x128xf32>
    %c0_9 = arith.constant 0 : index
    %c0_10 = arith.constant 0 : index
    %c0_11 = arith.constant 0 : index
    %26 = vector.load %arg3[%c0_9, %c0_10, %c0_11] : memref<1x16x128xbf16, #tpu.memory_space<vmem>>, vector<1x16x128xbf16>
    %27 = vector.shape_cast %26 : vector<1x16x128xbf16> to vector<16x128xbf16>
    %28 = vector.shape_cast %17 : vector<16x128xbf16> to vector<1x16x128xbf16>
    tpu.vector_store %arg3[%c0_9, %c0_10, %c0_11], %28 {strides = array<i32>} : memref<1x16x128xbf16, #tpu.memory_space<vmem>>, vector<1x16x128xbf16>,
    %c0_12 = arith.constant 0 : index
    %c0_13 = arith.constant 0 : index
    %c0_14 = arith.constant 0 : index
    %29 = vector.load %arg4[%c0_12, %c0_13, %c0_14] : memref<1x8x128xf32, #tpu.memory_space<vmem>>, vector<1x8x128xf32>
    %30 = vector.shape_cast %29 : vector<1x8x128xf32> to vector<8x128xf32>
    %31 = vector.shape_cast %25 : vector<8x128xf32> to vector<1x8x128xf32>
    tpu.vector_store %arg4[%c0_12, %c0_13, %c0_14], %31 {strides = array<i32>} : memref<1x8x128xf32, #tpu.memory_space<vmem>>, vector<1x8x128xf32>,
    return
  }
  func.func @transform_0(%arg0: i32) -> (i32, i32, i32) {
    %c0_i32 = arith.constant 0 : i32
    %c0_i32_0 = arith.constant 0 : i32
    %c0_i32_1 = arith.constant 0 : i32
    return %arg0, %c0_i32, %c0_i32_0 : i32, i32, i32
  }
  func.func @transform_1(%arg0: i32) -> (i32, i32) {
    %c0_i32 = arith.constant 0 : i32
    %c0_i32_0 = arith.constant 0 : i32
    %c0_i32_1 = arith.constant 0 : i32
    return %c0_i32, %c0_i32_0 : i32, i32
  }
  func.func @transform_2(%arg0: i32) -> (i32, i32, i32) {
    %c0_i32 = arith.constant 0 : i32
    %c0_i32_0 = arith.constant 0 : i32
    %c0_i32_1 = arith.constant 0 : i32
    return %arg0, %c0_i32, %c0_i32_0 : i32, i32, i32
  }
  func.func @transform_3(%arg0: i32) -> (i32, i32, i32) {
    %c0_i32 = arith.constant 0 : i32
    %c0_i32_0 = arith.constant 0 : i32
    %c0_i32_1 = arith.constant 0 : i32
    return %arg0, %c0_i32, %c0_i32_0 : i32, i32, i32
  }
}

module attributes {stable_mosaic.version = 11 : i64} {
  func.func @_norm_conv2_kernel(%arg0: i32, %arg1: memref<1x16x128xbf16, #tpu.memory_space<vmem>>, %arg2: memref<1x128xf32, #tpu.memory_space<vmem>>, %arg3: memref<1x128xf32, #tpu.memory_space<vmem>>, %arg4: memref<384x128xbf16, #tpu.memory_space<vmem>>, %arg5: memref<1x16x128xbf16, #tpu.memory_space<vmem>>, %arg6: memref<1x8x128xf32, #tpu.memory_space<vmem>>) attributes {dimension_semantics = [#tpu.dimension_semantics<parallel>], iteration_bounds = array<i64: 2>, scalar_prefetch = 0 : i64, scratch_operands = 0 : i64, tpu.core_type = #tpu.core_type<tc>, window_params = [{transform_indices = @transform_0, window_bounds = array<i64: 1, 16, 128>}, {pipeline_mode = #tpu.pipeline_mode<synchronous>, transform_indices = @transform_1, window_bounds = array<i64: 1, 128>}, {pipeline_mode = #tpu.pipeline_mode<synchronous>, transform_indices = @transform_2, window_bounds = array<i64: 1, 128>}, {pipeline_mode = #tpu.pipeline_mode<synchronous>, transform_indices = @transform_3, window_bounds = array<i64: 384, 128>}, {transform_indices = @transform_4, window_bounds = array<i64: 1, 16, 128>}, {transform_indices = @transform_5, window_bounds = array<i64: 1, 8, 128>}]} {
    %c0 = arith.constant 0 : index
    %c0_0 = arith.constant 0 : index
    %c0_1 = arith.constant 0 : index
    %0 = vector.load %arg1[%c0, %c0_0, %c0_1] : memref<1x16x128xbf16, #tpu.memory_space<vmem>>, vector<1x16x128xbf16>
    %1 = vector.shape_cast %0 : vector<1x16x128xbf16> to vector<16x128xbf16>
    %c0_2 = arith.constant 0 : index
    %c0_3 = arith.constant 0 : index
    %2 = vector.load %arg2[%c0_2, %c0_3] : memref<1x128xf32, #tpu.memory_space<vmem>>, vector<1x128xf32>
    %3 = arith.extf %1 : vector<16x128xbf16> to vector<16x128xf32>
    %4 = vector.broadcast %2 : vector<1x128xf32> to vector<16x128xf32>
    %5 = arith.mulf %3, %4 : vector<16x128xf32>
    %c0_4 = arith.constant 0 : index
    %c0_5 = arith.constant 0 : index
    %6 = vector.load %arg3[%c0_4, %c0_5] : memref<1x128xf32, #tpu.memory_space<vmem>>, vector<1x128xf32>
    %7 = vector.broadcast %6 : vector<1x128xf32> to vector<16x128xf32>
    %8 = arith.addf %5, %7 : vector<16x128xf32>
    %cst = arith.constant 0.000000e+00 : f32
    %9 = vector.broadcast %cst : f32 to vector<16x128xf32>
    %10 = arith.maximumf %8, %9 : vector<16x128xf32>
    %11 = tpu.iota {dimensions = array<i32: 0>} : vector<16x1xi32>
    %c16_i32 = arith.constant 16 : i32
    %12 = vector.broadcast %c16_i32 : i32 to vector<16x1xi32>
    %13 = arith.cmpi slt, %11, %12 : vector<16x1xi32>
    %cst_6 = arith.constant 0.000000e+00 : f32
    %14 = vector.shape_cast %13 : vector<16x1xi1> to vector<16x1xi1>
    %15 = vector.broadcast %14 : vector<16x1xi1> to vector<16x128xi1>
    %16 = vector.broadcast %cst_6 : f32 to vector<16x128xf32>
    %17 = arith.select %15, %10, %16 : vector<16x128xi1>, vector<16x128xf32>
    %18 = arith.truncf %17 : vector<16x128xf32> to vector<16x128xbf16>
    %cst_7 = arith.constant 0.000000e+00 : bf16
    %19 = vector.broadcast %cst_7 : bf16 to vector<1x128xbf16>
    %20 = vector.extract_strided_slice %18 {offsets = [0, 0], sizes = [15, 128], strides = [1, 1]} : vector<16x128xbf16> to vector<15x128xbf16>
    %21 = tpu.concatenate %19, %20 in 0 : vector<1x128xbf16>, vector<15x128xbf16> -> vector<16x128xbf16>
    %22 = vector.extract_strided_slice %18 {offsets = [1, 0], sizes = [15, 128], strides = [1, 1]} : vector<16x128xbf16> to vector<15x128xbf16>
    %23 = tpu.concatenate %22, %19 in 0 : vector<15x128xbf16>, vector<1x128xbf16> -> vector<16x128xbf16>
    %24 = tpu.concatenate %21, %18, %23 in 1 : vector<16x128xbf16>, vector<16x128xbf16>, vector<16x128xbf16> -> vector<16x384xbf16>
    %c0_8 = arith.constant 0 : index
    %c0_9 = arith.constant 0 : index
    %25 = vector.load %arg4[%c0_8, %c0_9] : memref<384x128xbf16, #tpu.memory_space<vmem>>, vector<384x128xbf16>
    %cst_10 = arith.constant dense<0.000000e+00> : vector<16x128xf32>
    %26 = tpu.matmul %24, %25, %cst_10 {dimension_numbers = #tpu.dot_dimension_numbers<[1], [0], [0], [1], [0, 0, 1, 1], [], []>} : vector<16x384xbf16>, vector<384x128xbf16>, vector<16x128xf32> -> vector<16x128xf32>
    %27 = tpu.iota {dimensions = array<i32: 0>} : vector<16x1xi32>
    %c16_i32_11 = arith.constant 16 : i32
    %28 = vector.broadcast %c16_i32_11 : i32 to vector<16x1xi32>
    %29 = arith.cmpi slt, %27, %28 : vector<16x1xi32>
    %cst_12 = arith.constant 0.000000e+00 : f32
    %30 = vector.shape_cast %29 : vector<16x1xi1> to vector<16x1xi1>
    %31 = vector.broadcast %30 : vector<16x1xi1> to vector<16x128xi1>
    %32 = vector.broadcast %cst_12 : f32 to vector<16x128xf32>
    %33 = arith.select %31, %26, %32 : vector<16x128xi1>, vector<16x128xf32>
    %34 = arith.truncf %33 : vector<16x128xf32> to vector<16x128xbf16>
    %35 = arith.extf %34 : vector<16x128xbf16> to vector<16x128xf32>
    %cst_13 = arith.constant dense<0.000000e+00> : vector<128xf32>
    %36 = vector.multi_reduction <add>, %35, %cst_13 [0] : vector<16x128xf32> to vector<128xf32>
    %37 = vector.shape_cast %36 : vector<128xf32> to vector<1x128xf32>
    %38 = arith.mulf %35, %35 : vector<16x128xf32>
    %cst_14 = arith.constant dense<0.000000e+00> : vector<128xf32>
    %39 = vector.multi_reduction <add>, %38, %cst_14 [0] : vector<16x128xf32> to vector<128xf32>
    %40 = vector.shape_cast %39 : vector<128xf32> to vector<1x128xf32>
    %cst_15 = arith.constant 0.000000e+00 : f32
    %41 = vector.broadcast %cst_15 : f32 to vector<6x128xf32>
    %42 = tpu.concatenate %37, %40, %41 in 0 : vector<1x128xf32>, vector<1x128xf32>, vector<6x128xf32> -> vector<8x128xf32>
    %c0_16 = arith.constant 0 : index
    %c0_17 = arith.constant 0 : index
    %c0_18 = arith.constant 0 : index
    %43 = vector.load %arg5[%c0_16, %c0_17, %c0_18] : memref<1x16x128xbf16, #tpu.memory_space<vmem>>, vector<1x16x128xbf16>
    %44 = vector.shape_cast %43 : vector<1x16x128xbf16> to vector<16x128xbf16>
    %45 = vector.shape_cast %34 : vector<16x128xbf16> to vector<1x16x128xbf16>
    tpu.vector_store %arg5[%c0_16, %c0_17, %c0_18], %45 {strides = array<i32>} : memref<1x16x128xbf16, #tpu.memory_space<vmem>>, vector<1x16x128xbf16>,
    %c0_19 = arith.constant 0 : index
    %c0_20 = arith.constant 0 : index
    %c0_21 = arith.constant 0 : index
    %46 = vector.load %arg6[%c0_19, %c0_20, %c0_21] : memref<1x8x128xf32, #tpu.memory_space<vmem>>, vector<1x8x128xf32>
    %47 = vector.shape_cast %46 : vector<1x8x128xf32> to vector<8x128xf32>
    %48 = vector.shape_cast %42 : vector<8x128xf32> to vector<1x8x128xf32>
    tpu.vector_store %arg6[%c0_19, %c0_20, %c0_21], %48 {strides = array<i32>} : memref<1x8x128xf32, #tpu.memory_space<vmem>>, vector<1x8x128xf32>,
    return
  }
  func.func @transform_0(%arg0: i32) -> (i32, i32, i32) {
    %c0_i32 = arith.constant 0 : i32
    %c0_i32_0 = arith.constant 0 : i32
    %c0_i32_1 = arith.constant 0 : i32
    return %arg0, %c0_i32, %c0_i32_0 : i32, i32, i32
  }
  func.func @transform_1(%arg0: i32) -> (i32, i32) {
    %c0_i32 = arith.constant 0 : i32
    %c0_i32_0 = arith.constant 0 : i32
    %c0_i32_1 = arith.constant 0 : i32
    return %c0_i32, %c0_i32_0 : i32, i32
  }
  func.func @transform_2(%arg0: i32) -> (i32, i32) {
    %c0_i32 = arith.constant 0 : i32
    %c0_i32_0 = arith.constant 0 : i32
    %c0_i32_1 = arith.constant 0 : i32
    return %c0_i32, %c0_i32_0 : i32, i32
  }
  func.func @transform_3(%arg0: i32) -> (i32, i32) {
    %c0_i32 = arith.constant 0 : i32
    %c0_i32_0 = arith.constant 0 : i32
    %c0_i32_1 = arith.constant 0 : i32
    return %c0_i32, %c0_i32_0 : i32, i32
  }
  func.func @transform_4(%arg0: i32) -> (i32, i32, i32) {
    %c0_i32 = arith.constant 0 : i32
    %c0_i32_0 = arith.constant 0 : i32
    %c0_i32_1 = arith.constant 0 : i32
    return %arg0, %c0_i32, %c0_i32_0 : i32, i32, i32
  }
  func.func @transform_5(%arg0: i32) -> (i32, i32, i32) {
    %c0_i32 = arith.constant 0 : i32
    %c0_i32_0 = arith.constant 0 : i32
    %c0_i32_1 = arith.constant 0 : i32
    return %arg0, %c0_i32, %c0_i32_0 : i32, i32, i32
  }
}

</mosaic_0001>

<llo_original>
// kernel: stdunet_block.2
$region0: #{stdunet_block.2}
  #allocation0 [shape = 'u32[]', space=smem, size = 0x4, offset = 0x4, fixed_abs, tag = 'smem constant byte address 0x4 - core index']
  #allocation1 [shape = 'u32[72,128]{1,0:T(1,128)}', space=vmem, size = 0x9000, scoped, tag = 'internal scratch']
  %s0 = inlined_call_operand.vmem [shape: bf16[2,16,128], index: 0, kind: input, shape index: {}]
  %s1 = inlined_call_operand.vmem [shape: bf16[384,128], index: 1, kind: input, shape index: {}]
  %s2 = inlined_call_operand.vmem [shape: bf16[2,16,128], index: 2, kind: output, shape index: {0}]
  %s3 = inlined_call_operand.vmem [shape: f32[2,8,128], index: 3, kind: output, shape index: {1}]
  %4 = xla_tuple %s2, %s3
  %s5 = sld [smem:[#allocation0]]
  $region49: #{stdunet_block.2} parent=0
    _
  %s7 = ssub.s32 1, %s5
  %s8 = scalar_select 0, %s7, %s5
  loop: start=0, step=1, limit=4
  $region2: #{stdunet_block.2} parent=0 // loop_pre_header
    _
  $region3: #{stdunet_block.2} parent=0 // loop_header
    %s10 = sphi 0, %s14
    %p11 = scmp.ge.s32.totalorder %s10, 4
    %s20 = sphi 0, %s22
    %s23 = sphi 0, %s20
    %s24 = sphi 0, %s23
    %s40 = sphi 0, %s24
    %s44 = sphi 0, %s44
    %s46 = sphi 0, %s44
    %s47 = sphi 0, %s46
    %s61 = sphi 0, %s47
    %s67 = sphi 0, %s69
    %s70 = sphi 0, %s67
    %s71 = sphi 0, %s70
    %s87 = sphi 0, %s71
    %s93 = sphi 0, %s95
    %s96 = sphi 0, %s93
    %s97 = sphi 0, %s96
    %s113 = sphi 0, %s97
  $region4: #{stdunet_block.2} parent=0 // loop_header_branch
    %13 = sbr.rel (%p11) target = $region8
  $region5: #{stdunet_block.2} parent=0 // loop_body
    %s15 = ssub.s32 %s10, 1
    %s16 = ssub.s32 %s10, 2
    %s17 = sadd.s32 %s10, 1
    %s18 = ssub.s32 %s10, %s17
    %p19 = scmp.eq.s32.totalorder %s18, 0
    %s21 = sadd.s32 %s20, 1
    %s22 = scalar_select %p19, %s20, %s21
    %p25 = pneg %p19
    %p26 = scmp.eq.s32.totalorder %s10, 1
    %p27 = por %p25, %p26
    %p28 = scmp.ne.s32.totalorder %s20, %s23
    %p29 = scmp.eq.s32.totalorder %s10, 0
    %p30 = por %p28, %p29
    %p31 = scmp.ne.s32.totalorder %s20, %s23
    %p32 = scmp.eq.s32.totalorder %s15, 1
    %p33 = por %p31, %p32
    %p34 = scmp.ne.s32.totalorder %s23, %s24
    %p35 = scmp.eq.s32.totalorder %s15, 0
    %p36 = por %p34, %p35
    %p37 = scmp.ne.s32.totalorder %s23, %s24
    %p38 = scmp.eq.s32.totalorder %s16, 1
    %p39 = por %p37, %p38
    %p41 = scmp.ne.s32.totalorder %s24, %s40
    %p42 = scmp.eq.s32.totalorder %s16, 0
    %p43 = por %p41, %p42
    %s45 = sadd.s32 %s44, 1
    %p48 = scmp.eq.s32.totalorder %s10, 1
    %p49 = scmp.ne.s32.totalorder %s44, %s46
    %p50 = scmp.eq.s32.totalorder %s10, 0
    %p51 = por %p49, %p50
    %p52 = scmp.ne.s32.totalorder %s44, %s46
    %p53 = scmp.eq.s32.totalorder %s15, 1
    %p54 = por %p52, %p53
    %p55 = scmp.ne.s32.totalorder %s46, %s47
    %p56 = scmp.eq.s32.totalorder %s15, 0
    %p57 = por %p55, %p56
    %p58 = scmp.ne.s32.totalorder %s46, %s47
    %p59 = scmp.eq.s32.totalorder %s16, 1
    %p60 = por %p58, %p59
    %p62 = scmp.ne.s32.totalorder %s47, %s61
    %p63 = scmp.eq.s32.totalorder %s16, 0
    %p64 = por %p62, %p63
    %s65 = ssub.s32 %s10, %s17
    %p66 = scmp.eq.s32.totalorder %s65, 0
    %s68 = sadd.s32 %s67, 1
    %s69 = scalar_select %p66, %s67, %s68
    %p72 = pneg %p66
    %p73 = scmp.eq.s32.totalorder %s10, 1
    %p74 = por %p72, %p73
    %p75 = scmp.ne.s32.totalorder %s67, %s70
    %p76 = scmp.eq.s32.totalorder %s10, 0
    %p77 = por %p75, %p76
    %p78 = scmp.ne.s32.totalorder %s67, %s70
    %p79 = scmp.eq.s32.totalorder %s15, 1
    %p80 = por %p78, %p79
    %p81 = scmp.ne.s32.totalorder %s70, %s71
    %p82 = scmp.eq.s32.totalorder %s15, 0
    %p83 = por %p81, %p82
    %p84 = scmp.ne.s32.totalorder %s70, %s71
    %p85 = scmp.eq.s32.totalorder %s16, 1
    %p86 = por %p84, %p85
    %p88 = scmp.ne.s32.totalorder %s71, %s87
    %p89 = scmp.eq.s32.totalorder %s16, 0
    %p90 = por %p88, %p89
    %s91 = ssub.s32 %s10, %s17
    %p92 = scmp.eq.s32.totalorder %s91, 0
    %s94 = sadd.s32 %s93, 1
    %s95 = scalar_select %p92, %s93, %s94
    %p98 = pneg %p92
    %p99 = scmp.eq.s32.totalorder %s10, 1
    %p100 = por %p98, %p99
    %p101 = scmp.ne.s32.totalorder %s93, %s96
    %p102 = scmp.eq.s32.totalorder %s10, 0
    %p103 = por %p101, %p102
    %p104 = scmp.ne.s32.totalorder %s93, %s96
    %p105 = scmp.eq.s32.totalorder %s15, 1
    %p106 = por %p104, %p105
    %p107 = scmp.ne.s32.totalorder %s96, %s97
    %p108 = scmp.eq.s32.totalorder %s15, 0
    %p109 = por %p107, %p108
    %p110 = scmp.ne.s32.totalorder %s96, %s97
    %p111 = scmp.eq.s32.totalorder %s16, 1
    %p112 = por %p110, %p111
    %p114 = scmp.ne.s32.totalorder %s97, %s113
    %p115 = scmp.eq.s32.totalorder %s16, 0
    %p116 = por %p114, %p115
    %p117 = scmp.le.s32.totalorder 1, %s10
    %p118 = scmp.lt.s32.totalorder %s10, 3
    %p119 = pnand %p117, %p118
    %p120 = pneg %p119
    // Predicated region
    $region9: #{stdunet_block.2} parent=5 // pred_check
      _
    $region10: #{stdunet_block.2} parent=5 // pred_check_branch
      %122 = sbr.rel (%p119) target = $region12
    $region11: #{stdunet_block.2} parent=5 // pred_region
      %s123 = ssub.s32 %s10, 1
      // Predicated region
      $region13: #{stdunet_block.2} parent=11 // pred_check
        %p124 = pneg %p57
      $region14: #{stdunet_block.2} parent=11 // pred_check_branch
        %126 = sbr.rel (%p124) target = $region16
      $region15: #{stdunet_block.2} parent=11 // pred_region
        _
      $region16: #{stdunet_block.2} parent=11 // pred_fallthru
        _
    $region12: #{stdunet_block.2} parent=5 // pred_fallthru
      _
    %p127 = scmp.lt.s32.totalorder %s10, 2
    // Predicated region
    $region17: #{stdunet_block.2} parent=5 // pred_check
      %p128 = pneg %p127
    $region18: #{stdunet_block.2} parent=5 // pred_check_branch
      %130 = sbr.rel (%p128) target = $region20
    $region19: #{stdunet_block.2} parent=5 // pred_region
      // Predicated region
      $region21: #{stdunet_block.2} parent=19 // pred_check
        %p131 = pneg %p30
      $region22: #{stdunet_block.2} parent=19 // pred_check_branch
        %133 = sbr.rel (%p131) target = $region24
      $region23: #{stdunet_block.2} parent=19 // pred_region
        %p134 = scmp.lt.s32.totalorder %s10, 1
        %s135 = scalar_select %p134, %s10, 1
        %s136 = smul.addr %s135, 2
        %s137 = smul.addr %s136, 4
        %s138 = scalar_lea.vmem %s0, %s137
      $region24: #{stdunet_block.2} parent=19 // pred_fallthru
        _
    $region20: #{stdunet_block.2} parent=5 // pred_fallthru
      _
    %p139 = scmp.le.s32.totalorder 1, %s10
    %p140 = scmp.lt.s32.totalorder %s10, 3
    %p141 = pnand %p139, %p140
    %p142 = pneg %p141
    // Predicated region
    $region25: #{stdunet_block.2} parent=5 // pred_check
      _
    $region26: #{stdunet_block.2} parent=5 // pred_check_branch
      %144 = sbr.rel (%p141) target = $region28
    $region27: #{stdunet_block.2} parent=5 // pred_region
      %s145 = ssub.s32 %s10, 1
      %p146 = scmp.lt.s32.totalorder %s15, 1
      %s147 = scalar_select %p146, %s15, 1
      %s148 = smul.addr %s147, 2
      %s149 = smul.addr %s148, 4
      %s150 = scalar_lea.vmem %s0, %s149
      %p151 = pneg %p36
      %p152 = pneg %p33
      %p153 = pneg %p57
      %p154 = pneg %p54
      %p155 = pneg %p83
      %p156 = pneg %p80
      %p157 = scmp.lt.s32.totalorder %s15, 1
      %s158 = scalar_select %p157, %s15, 1
      %s159 = smul.addr %s158, 2
      %s160 = smul.addr %s159, 4
      %s161 = scalar_lea.vmem %s2, %s160
      %p162 = pneg %p109
      %p163 = pneg %p106
      %p164 = scmp.lt.s32.totalorder %s15, 1
      %s165 = scalar_select %p164, %s15, 1
      %s166 = smul.addr %s165, 8
      %s167 = scalar_lea.vmem %s3, %s166
      %p168 = scmp.lt.s32.totalorder %s15, 1
      %s169 = scalar_select %p168, %s15, 1
      %s170 = smul.addr %s169, 2
      %s171 = smul.addr %s170, 4
      %s172 = scalar_lea.vmem %s0, %s171
      %p173 = scmp.lt.s32.totalorder %s15, 1
      %s174 = scalar_select %p173, %s15, 1
      %s175 = smul.addr %s174, 2
      %s176 = smul.addr %s175, 4
      %s177 = scalar_lea.vmem %s2, %s176
      %p178 = scmp.lt.s32.totalorder %s15, 1
      %s179 = scalar_select %p178, %s15, 1
      %s180 = smul.addr %s179, 8
      %s181 = scalar_lea.vmem %s3, %s180
      %v183 = vld [vmem:[%s172] sm:$0xf]
      %v184 = vld [vmem:[%s172 + $0x4] sm:$0xf]
      %v187 = vunpack.c.l.b16 %v183
      %v188 = vunpack.c.l.b16 %v184
      %v189 = vpack.c.b16 %v188, %v187
      %v191 = vshrl.u32 %v189, 16
      %v193 = vrot.slane %v191, 7
      %v194 = vshll.u32 %v189, 16
      %v196 = vor.u32 %v193, %v194
      %vm198 = vcmask 1040384
      %vm199 = vsmask.f32 256
      %vm200 = vmand %vm198, %vm199
      %v201 = vsel %vm200, 0, %v196
      %v202 = vrot.slane %v194, 1
      %v203 = vor.u32 %v191, %v202
      %vm205 = vcmask 1047552
      %vm206 = vsmask.f32 7424
      %vm207 = vmand %vm205, %vm206
      %v208 = vsel %vm207, %v203, 0
      %v210 = vld [vmem:[%s1] sm:$0xf]
      %v211 = vld [vmem:[%s1 + $0x4] sm:$0xf]
      %v212 = vld [vmem:[%s1 + $0x8] sm:$0xf]
      %v213 = vld [vmem:[%s1 + $0xc] sm:$0xf]
      %v214 = vld [vmem:[%s1 + $0x10] sm:$0xf]
      %v215 = vld [vmem:[%s1 + $0x14] sm:$0xf]
      %v216 = vld [vmem:[%s1 + $0x18] sm:$0xf]
      %v217 = vld [vmem:[%s1 + $0x1c] sm:$0xf]
      %v218 = vld [vmem:[%s1 + $0x20] sm:$0xf]
      %v219 = vld [vmem:[%s1 + $0x24] sm:$0xf]
      %v220 = vld [vmem:[%s1 + $0x28] sm:$0xf]
      %v221 = vld [vmem:[%s1 + $0x2c] sm:$0xf]
      %v222 = vld [vmem:[%s1 + $0x30] sm:$0xf]
      %v223 = vld [vmem:[%s1 + $0x34] sm:$0xf]
      %v224 = vld [vmem:[%s1 + $0x38] sm:$0xf]
      %v225 = vld [vmem:[%s1 + $0x3c] sm:$0xf]
      %v226 = vld [vmem:[%s1 + $0x40] sm:$0xf]
      %v227 = vld [vmem:[%s1 + $0x44] sm:$0xf]
      %v228 = vld [vmem:[%s1 + $0x48] sm:$0xf]
      %v229 = vld [vmem:[%s1 + $0x4c] sm:$0xf]
      %v230 = vld [vmem:[%s1 + $0x50] sm:$0xf]
      %v231 = vld [vmem:[%s1 + $0x54] sm:$0xf]
      %v232 = vld [vmem:[%s1 + $0x58] sm:$0xf]
      %v233 = vld [vmem:[%s1 + $0x5c] sm:$0xf]
      %v234 = vld [vmem:[%s1 + $0x60] sm:$0xf]
      %v235 = vld [vmem:[%s1 + $0x64] sm:$0xf]
      %v236 = vld [vmem:[%s1 + $0x68] sm:$0xf]
      %v237 = vld [vmem:[%s1 + $0x6c] sm:$0xf]
      %v238 = vld [vmem:[%s1 + $0x70] sm:$0xf]
      %v239 = vld [vmem:[%s1 + $0x74] sm:$0xf]
      %v240 = vld [vmem:[%s1 + $0x78] sm:$0xf]
      %v241 = vld [vmem:[%s1 + $0x7c] sm:$0xf]
      %v242 = vld [vmem:[%s1 + $0x80] sm:$0xf]
      %v243 = vld [vmem:[%s1 + $0x84] sm:$0xf]
      %v244 = vld [vmem:[%s1 + $0x88] sm:$0xf]
      %v245 = vld [vmem:[%s1 + $0x8c] sm:$0xf]
      %v246 = vld [vmem:[%s1 + $0x90] sm:$0xf]
      %v247 = vld [vmem:[%s1 + $0x94] sm:$0xf]
      %v248 = vld [vmem:[%s1 + $0x98] sm:$0xf]
      %v249 = vld [vmem:[%s1 + $0x9c] sm:$0xf]
      %v250 = vld [vmem:[%s1 + $0xa0] sm:$0xf]
      %v251 = vld [vmem:[%s1 + $0xa4] sm:$0xf]
      %v252 = vld [vmem:[%s1 + $0xa8] sm:$0xf]
      %v253 = vld [vmem:[%s1 + $0xac] sm:$0xf]
      %v254 = vld [vmem:[%s1 + $0xb0] sm:$0xf]
      %v255 = vld [vmem:[%s1 + $0xb4] sm:$0xf]
      %v256 = vld [vmem:[%s1 + $0xb8] sm:$0xf]
      %v257 = vld [vmem:[%s1 + $0xbc] sm:$0xf]
      %v306 = vunpack.c.l.b16 %v210
      %v307 = vunpack.c.l.b16 %v211
      %v308 = vunpack.c.l.b16 %v212
      %v309 = vunpack.c.l.b16 %v213
      %v310 = vunpack.c.l.b16 %v214
      %v311 = vunpack.c.l.b16 %v215
      %v312 = vunpack.c.l.b16 %v216
      %v313 = vunpack.c.l.b16 %v217
      %v314 = vunpack.c.l.b16 %v218
      %v315 = vunpack.c.l.b16 %v219
      %v316 = vunpack.c.l.b16 %v220
      %v317 = vunpack.c.l.b16 %v221
      %v318 = vunpack.c.l.b16 %v222
      %v319 = vunpack.c.l.b16 %v223
      %v320 = vunpack.c.l.b16 %v224
      %v321 = vunpack.c.l.b16 %v225
      %v322 = vunpack.c.l.b16 %v226
      %v323 = vunpack.c.l.b16 %v227
      %v324 = vunpack.c.l.b16 %v228
      %v325 = vunpack.c.l.b16 %v229
      %v326 = vunpack.c.l.b16 %v230
      %v327 = vunpack.c.l.b16 %v231
      %v328 = vunpack.c.l.b16 %v232
      %v329 = vunpack.c.l.b16 %v233
      %v330 = vunpack.c.l.b16 %v234
      %v331 = vunpack.c.l.b16 %v235
      %v332 = vunpack.c.l.b16 %v236
      %v333 = vunpack.c.l.b16 %v237
      %v334 = vunpack.c.l.b16 %v238
      %v335 = vunpack.c.l.b16 %v239
      %v336 = vunpack.c.l.b16 %v240
      %v337 = vunpack.c.l.b16 %v241
      %v338 = vunpack.c.l.b16 %v242
      %v339 = vunpack.c.l.b16 %v243
      %v340 = vunpack.c.l.b16 %v244
      %v341 = vunpack.c.l.b16 %v245
      %v342 = vunpack.c.l.b16 %v246
      %v343 = vunpack.c.l.b16 %v247
      %v344 = vunpack.c.l.b16 %v248
      %v345 = vunpack.c.l.b16 %v249
      %v346 = vunpack.c.l.b16 %v250
      %v347 = vunpack.c.l.b16 %v251
      %v348 = vunpack.c.l.b16 %v252
      %v349 = vunpack.c.l.b16 %v253
      %v350 = vunpack.c.l.b16 %v254
      %v351 = vunpack.c.l.b16 %v255
      %v352 = vunpack.c.l.b16 %v256
      %v353 = vunpack.c.l.b16 %v257
      %v354 = vpack.c.b16 %v307, %v306
      %v355 = vpack.c.b16 %v309, %v308
      %v356 = vpack.c.b16 %v311, %v310
      %v357 = vpack.c.b16 %v313, %v312
      %v358 = vpack.c.b16 %v315, %v314
      %v359 = vpack.c.b16 %v317, %v316
      %v360 = vpack.c.b16 %v319, %v318
      %v361 = vpack.c.b16 %v321, %v320
      %v362 = vpack.c.b16 %v323, %v322
      %v363 = vpack.c.b16 %v325, %v324
      %v364 = vpack.c.b16 %v327, %v326
      %v365 = vpack.c.b16 %v329, %v328
      %v366 = vpack.c.b16 %v331, %v330
      %v367 = vpack.c.b16 %v333, %v332
      %v368 = vpack.c.b16 %v335, %v334
      %v369 = vpack.c.b16 %v337, %v336
      %v370 = vpack.c.b16 %v339, %v338
      %v371 = vpack.c.b16 %v341, %v340
      %v372 = vpack.c.b16 %v343, %v342
      %v373 = vpack.c.b16 %v345, %v344
      %v374 = vpack.c.b16 %v347, %v346
      %v375 = vpack.c.b16 %v349, %v348
      %v376 = vpack.c.b16 %v351, %v350
      %v377 = vpack.c.b16 %v353, %v352
      %402 = vmatpush.bf16.msra.mxu0 %v361
      %403 = vmatpush.bf16.msra.mxu0 %v360
      %404 = vmatpush.bf16.msra.mxu0 %v359
      %405 = vmatpush.bf16.msra.mxu0 %v358
      %406 = vmatpush.bf16.msra.mxu0 %v357
      %407 = vmatpush.bf16.msra.mxu0 %v356
      %408 = vmatpush.bf16.msra.mxu0 %v355
      %409 = vmatpush.bf16.msra.mxu0 %v354
      %410 = vmatmul.bf16.gmra.mxu0 %v201
      %v411 = vpop.f32.mrf.mxu0
      %v412 = vadd.f32 0.0, %v411
      %v413 = vpop.f32.mrf.mxu0
      %v414 = vadd.f32 0.0, %v413
      %415 = vdwg.mxu0
      %416 = vmatpush.bf16.msra.mxu0 %v369
      %417 = vmatpush.bf16.msra.mxu0 %v368
      %418 = vmatpush.bf16.msra.mxu0 %v367
      %419 = vmatpush.bf16.msra.mxu0 %v366
      %420 = vmatpush.bf16.msra.mxu0 %v365
      %421 = vmatpush.bf16.msra.mxu0 %v364
      %422 = vmatpush.bf16.msra.mxu0 %v363
      %423 = vmatpush.bf16.msra.mxu0 %v362
      %424 = vmatmul.bf16.gmra.mxu0 %v189
      %v425 = vpop.f32.mrf.mxu0
      %v426 = vadd.f32 %v412, %v425
      %v427 = vpop.f32.mrf.mxu0
      %v428 = vadd.f32 %v414, %v427
      %429 = vdwg.mxu0
      %430 = vmatpush.bf16.msra.mxu0 %v377
      %431 = vmatpush.bf16.msra.mxu0 %v376
      %432 = vmatpush.bf16.msra.mxu0 %v375
      %433 = vmatpush.bf16.msra.mxu0 %v374
      %434 = vmatpush.bf16.msra.mxu0 %v373
      %435 = vmatpush.bf16.msra.mxu0 %v372
      %436 = vmatpush.bf16.msra.mxu0 %v371
      %437 = vmatpush.bf16.msra.mxu0 %v370
      %438 = vmatmul.bf16.gmra.mxu0 %v208
      %v439 = vpop.f32.mrf.mxu0
      %v440 = vadd.f32 %v426, %v439
      %v441 = vpop.f32.mrf.mxu0
      %v442 = vadd.f32 %v428, %v441
      %443 = vdwg.mxu0
      %v444 = vlaneseq
      %v445 = vshrl.u32 %v444, 7
      %v446 = vadd.s32 %v445, 8
      %vm447 = vcmp.lt.s32.totalorder %v445, 16
      %vm448 = vcmp.lt.s32.totalorder %v446, 16
      %v449 = vsel %vm447, 1, 0
      %v450 = vsel %vm448, 1, 0
      %vm451 = vcmp.eq.s32.totalorder %v449, 1
      %vm452 = vcmp.eq.s32.totalorder %v450, 1
      %v453 = vsel %vm451, %v440, 0.0
      %v454 = vsel %vm452, %v442, 0.0
      %v455 = vpack.c.bf16 %v453, %v453
      %v456 = vpack.c.bf16 %v454, %v454
      %v457 = vunpack.c.l.bf16 %v455
      %v458 = vunpack.c.l.bf16 %v456
      %v459 = vadd.f32 %v457, %v458
      %v460 = vrot.slane %v459, 4
      %v461 = vadd.f32 %v459, %v460
      %v462 = vrot.slane %v461, 2
      %v463 = vadd.f32 %v461, %v462
      %v464 = vrot.slane %v463, 1
      %v465 = vadd.f32 %v463, %v464
      %v466 = vmul.f32 %v457, %v457
      %v467 = vmul.f32 %v458, %v458
      %v468 = vadd.f32 %v466, %v467
      %v469 = vrot.slane %v468, 4
      %v470 = vadd.f32 %v468, %v469
      %v471 = vrot.slane %v470, 2
      %v472 = vadd.f32 %v470, %v471
      %v473 = vrot.slane %v472, 1
      %v474 = vadd.f32 %v472, %v473
      %vm475 = vcmask 1040384
      %v476 = vsel %vm475, %v465, %v474
      %vm477 = vcmask 1041408
      %v478 = vsel %vm477, %v476, 0.0
      %479 = vst [vmem:[%s177] sm:$0xf] %v455
      %480 = vst [vmem:[%s177 + $0x4] sm:$0xf] %v456
      %481 = vst [vmem:[%s181] sm:$0xff] %v478
      %p482 = scmp.lt.s32.totalorder %s15, 1
      %s483 = scalar_select %p482, %s15, 1
      %s484 = smul.addr %s483, 2
      %s485 = smul.addr %s484, 4
      %s486 = scalar_lea.vmem %s2, %s485
      %p487 = scmp.lt.s32.totalorder %s15, 1
      %s488 = scalar_select %p487, %s15, 1
      %s489 = smul.addr %s488, 8
      %s490 = scalar_lea.vmem %s3, %s489
      // Predicated region
      $region29: #{stdunet_block.2} parent=27 // pred_check
        %p491 = pneg %p80
      $region30: #{stdunet_block.2} parent=27 // pred_check_branch
        %493 = sbr.rel (%p491) target = $region32
      $region31: #{stdunet_block.2} parent=27 // pred_region
        _
      $region32: #{stdunet_block.2} parent=27 // pred_fallthru
        _
      // Predicated region
      $region33: #{stdunet_block.2} parent=27 // pred_check
        %p494 = pneg %p106
      $region34: #{stdunet_block.2} parent=27 // pred_check_branch
        %496 = sbr.rel (%p494) target = $region36
      $region35: #{stdunet_block.2} parent=27 // pred_region
        _
      $region36: #{stdunet_block.2} parent=27 // pred_fallthru
        _
    $region28: #{stdunet_block.2} parent=5 // pred_fallthru
      _
    %p497 = scmp.le.s32.totalorder 2, %s10
    // Predicated region
    $region37: #{stdunet_block.2} parent=5 // pred_check
      %p498 = pneg %p497
    $region38: #{stdunet_block.2} parent=5 // pred_check_branch
      %500 = sbr.rel (%p498) target = $region40
    $region39: #{stdunet_block.2} parent=5 // pred_region
      %s501 = ssub.s32 %s10, 2
      // Predicated region
      $region41: #{stdunet_block.2} parent=39 // pred_check
        %p502 = pneg %p86
      $region42: #{stdunet_block.2} parent=39 // pred_check_branch
        %504 = sbr.rel (%p502) target = $region44
      $region43: #{stdunet_block.2} parent=39 // pred_region
        %p505 = scmp.lt.s32.totalorder %s16, 1
        %s506 = scalar_select %p505, %s16, 1
        %s507 = smul.addr %s506, 2
        %s508 = smul.addr %s507, 4
        %s509 = scalar_lea.vmem %s2, %s508
      $region44: #{stdunet_block.2} parent=39 // pred_fallthru
        _
      // Predicated region
      $region45: #{stdunet_block.2} parent=39 // pred_check
        %p510 = pneg %p112
      $region46: #{stdunet_block.2} parent=39 // pred_check_branch
        %512 = sbr.rel (%p510) target = $region48
      $region47: #{stdunet_block.2} parent=39 // pred_region
        %p513 = scmp.lt.s32.totalorder %s16, 1
        %s514 = scalar_select %p513, %s16, 1
        %s515 = smul.addr %s514, 8
        %s516 = scalar_lea.vmem %s3, %s515
      $region48: #{stdunet_block.2} parent=39 // pred_fallthru
        _
    $region40: #{stdunet_block.2} parent=5 // pred_fallthru
      _
  $region6: #{stdunet_block.2} parent=0 // loop_footer
    %s14 = sadd.s32 1, %s10
  $region7: #{stdunet_block.2} parent=0 // loop_footer_branch
    %9 = sbr.rel target = $region3
  $region8: #{stdunet_block.2} parent=0 // loop_exit
    _

// kernel: stdunet_block.3
$region0: #{stdunet_block.3}
  #allocation0 [shape = 'u32[]', space=smem, size = 0x4, offset = 0x4, fixed_abs, tag = 'smem constant byte address 0x4 - core index']
  #allocation1 [shape = 'u32[72,128]{1,0:T(1,128)}', space=vmem, size = 0x9000, scoped, tag = 'internal scratch']
  %s0 = inlined_call_operand.vmem [shape: bf16[2,16,128], index: 0, kind: input, shape index: {}]
  %s1 = inlined_call_operand.vmem [shape: f32[1,128], index: 1, kind: input, shape index: {}]
  %s2 = inlined_call_operand.vmem [shape: f32[1,128], index: 2, kind: input, shape index: {}]
  %s3 = inlined_call_operand.vmem [shape: bf16[384,128], index: 3, kind: input, shape index: {}]
  %s4 = inlined_call_operand.vmem [shape: bf16[2,16,128], index: 4, kind: output, shape index: {0}]
  %s5 = inlined_call_operand.vmem [shape: f32[2,8,128], index: 5, kind: output, shape index: {1}]
  %6 = xla_tuple %s4, %s5
  %s7 = sld [smem:[#allocation0]]
  $region57: #{stdunet_block.3} parent=0
    _
  %s9 = ssub.s32 1, %s7
  %s10 = scalar_select 0, %s9, %s7
  loop: start=0, step=1, limit=4
  $region2: #{stdunet_block.3} parent=0 // loop_pre_header
    _
  $region3: #{stdunet_block.3} parent=0 // loop_header
    %s12 = sphi 0, %s16
    %p13 = scmp.ge.s32.totalorder %s12, 4
    %s22 = sphi 0, %s24
    %s25 = sphi 0, %s22
    %s26 = sphi 0, %s25
    %s42 = sphi 0, %s26
    %s46 = sphi 0, %s46
    %s48 = sphi 0, %s46
    %s49 = sphi 0, %s48
    %s63 = sphi 0, %s49
    %s67 = sphi 0, %s67
    %s69 = sphi 0, %s67
    %s70 = sphi 0, %s69
    %s84 = sphi 0, %s70
    %s88 = sphi 0, %s88
    %s90 = sphi 0, %s88
    %s91 = sphi 0, %s90
    %s105 = sphi 0, %s91
    %s111 = sphi 0, %s113
    %s114 = sphi 0, %s111
    %s115 = sphi 0, %s114
    %s131 = sphi 0, %s115
    %s137 = sphi 0, %s139
    %s140 = sphi 0, %s137
    %s141 = sphi 0, %s140
    %s157 = sphi 0, %s141
  $region4: #{stdunet_block.3} parent=0 // loop_header_branch
    %15 = sbr.rel (%p13) target = $region8
  $region5: #{stdunet_block.3} parent=0 // loop_body
    %s17 = ssub.s32 %s12, 1
    %s18 = ssub.s32 %s12, 2
    %s19 = sadd.s32 %s12, 1
    %s20 = ssub.s32 %s12, %s19
    %p21 = scmp.eq.s32.totalorder %s20, 0
    %s23 = sadd.s32 %s22, 1
    %s24 = scalar_select %p21, %s22, %s23
    %p27 = pneg %p21
    %p28 = scmp.eq.s32.totalorder %s12, 1
    %p29 = por %p27, %p28
    %p30 = scmp.ne.s32.totalorder %s22, %s25
    %p31 = scmp.eq.s32.totalorder %s12, 0
    %p32 = por %p30, %p31
    %p33 = scmp.ne.s32.totalorder %s22, %s25
    %p34 = scmp.eq.s32.totalorder %s17, 1
    %p35 = por %p33, %p34
    %p36 = scmp.ne.s32.totalorder %s25, %s26
    %p37 = scmp.eq.s32.totalorder %s17, 0
    %p38 = por %p36, %p37
    %p39 = scmp.ne.s32.totalorder %s25, %s26
    %p40 = scmp.eq.s32.totalorder %s18, 1
    %p41 = por %p39, %p40
    %p43 = scmp.ne.s32.totalorder %s26, %s42
    %p44 = scmp.eq.s32.totalorder %s18, 0
    %p45 = por %p43, %p44
    %s47 = sadd.s32 %s46, 1
    %p50 = scmp.eq.s32.totalorder %s12, 1
    %p51 = scmp.ne.s32.totalorder %s46, %s48
    %p52 = scmp.eq.s32.totalorder %s12, 0
    %p53 = por %p51, %p52
    %p54 = scmp.ne.s32.totalorder %s46, %s48
    %p55 = scmp.eq.s32.totalorder %s17, 1
    %p56 = por %p54, %p55
    %p57 = scmp.ne.s32.totalorder %s48, %s49
    %p58 = scmp.eq.s32.totalorder %s17, 0
    %p59 = por %p57, %p58
    %p60 = scmp.ne.s32.totalorder %s48, %s49
    %p61 = scmp.eq.s32.totalorder %s18, 1
    %p62 = por %p60, %p61
    %p64 = scmp.ne.s32.totalorder %s49, %s63
    %p65 = scmp.eq.s32.totalorder %s18, 0
    %p66 = por %p64, %p65
    %s68 = sadd.s32 %s67, 1
    %p71 = scmp.eq.s32.totalorder %s12, 1
    %p72 = scmp.ne.s32.totalorder %s67, %s69
    %p73 = scmp.eq.s32.totalorder %s12, 0
    %p74 = por %p72, %p73
    %p75 = scmp.ne.s32.totalorder %s67, %s69
    %p76 = scmp.eq.s32.totalorder %s17, 1
    %p77 = por %p75, %p76
    %p78 = scmp.ne.s32.totalorder %s69, %s70
    %p79 = scmp.eq.s32.totalorder %s17, 0
    %p80 = por %p78, %p79
    %p81 = scmp.ne.s32.totalorder %s69, %s70
    %p82 = scmp.eq.s32.totalorder %s18, 1
    %p83 = por %p81, %p82
    %p85 = scmp.ne.s32.totalorder %s70, %s84
    %p86 = scmp.eq.s32.totalorder %s18, 0
    %p87 = por %p85, %p86
    %s89 = sadd.s32 %s88, 1
    %p92 = scmp.eq.s32.totalorder %s12, 1
    %p93 = scmp.ne.s32.totalorder %s88, %s90
    %p94 = scmp.eq.s32.totalorder %s12, 0
    %p95 = por %p93, %p94
    %p96 = scmp.ne.s32.totalorder %s88, %s90
    %p97 = scmp.eq.s32.totalorder %s17, 1
    %p98 = por %p96, %p97
    %p99 = scmp.ne.s32.totalorder %s90, %s91
    %p100 = scmp.eq.s32.totalorder %s17, 0
    %p101 = por %p99, %p100
    %p102 = scmp.ne.s32.totalorder %s90, %s91
    %p103 = scmp.eq.s32.totalorder %s18, 1
    %p104 = por %p102, %p103
    %p106 = scmp.ne.s32.totalorder %s91, %s105
    %p107 = scmp.eq.s32.totalorder %s18, 0
    %p108 = por %p106, %p107
    %s109 = ssub.s32 %s12, %s19
    %p110 = scmp.eq.s32.totalorder %s109, 0
    %s112 = sadd.s32 %s111, 1
    %s113 = scalar_select %p110, %s111, %s112
    %p116 = pneg %p110
    %p117 = scmp.eq.s32.totalorder %s12, 1
    %p118 = por %p116, %p117
    %p119 = scmp.ne.s32.totalorder %s111, %s114
    %p120 = scmp.eq.s32.totalorder %s12, 0
    %p121 = por %p119, %p120
    %p122 = scmp.ne.s32.totalorder %s111, %s114
    %p123 = scmp.eq.s32.totalorder %s17, 1
    %p124 = por %p122, %p123
    %p125 = scmp.ne.s32.totalorder %s114, %s115
    %p126 = scmp.eq.s32.totalorder %s17, 0
    %p127 = por %p125, %p126
    %p128 = scmp.ne.s32.totalorder %s114, %s115
    %p129 = scmp.eq.s32.totalorder %s18, 1
    %p130 = por %p128, %p129
    %p132 = scmp.ne.s32.totalorder %s115, %s131
    %p133 = scmp.eq.s32.totalorder %s18, 0
    %p134 = por %p132, %p133
    %s135 = ssub.s32 %s12, %s19
    %p136 = scmp.eq.s32.totalorder %s135, 0
    %s138 = sadd.s32 %s137, 1
    %s139 = scalar_select %p136, %s137, %s138
    %p142 = pneg %p136
    %p143 = scmp.eq.s32.totalorder %s12, 1
    %p144 = por %p142, %p143
    %p145 = scmp.ne.s32.totalorder %s137, %s140
    %p146 = scmp.eq.s32.totalorder %s12, 0
    %p147 = por %p145, %p146
    %p148 = scmp.ne.s32.totalorder %s137, %s140
    %p149 = scmp.eq.s32.totalorder %s17, 1
    %p150 = por %p148, %p149
    %p151 = scmp.ne.s32.totalorder %s140, %s141
    %p152 = scmp.eq.s32.totalorder %s17, 0
    %p153 = por %p151, %p152
    %p154 = scmp.ne.s32.totalorder %s140, %s141
    %p155 = scmp.eq.s32.totalorder %s18, 1
    %p156 = por %p154, %p155
    %p158 = scmp.ne.s32.totalorder %s141, %s157
    %p159 = scmp.eq.s32.totalorder %s18, 0
    %p160 = por %p158, %p159
    %p161 = scmp.le.s32.totalorder 1, %s12
    %p162 = scmp.lt.s32.totalorder %s12, 3
    %p163 = pnand %p161, %p162
    %p164 = pneg %p163
    // Predicated region
    $region9: #{stdunet_block.3} parent=5 // pred_check
      _
    $region10: #{stdunet_block.3} parent=5 // pred_check_branch
      %166 = sbr.rel (%p163) target = $region12
    $region11: #{stdunet_block.3} parent=5 // pred_region
      %s167 = ssub.s32 %s12, 1
      // Predicated region
      $region13: #{stdunet_block.3} parent=11 // pred_check
        %p168 = pneg %p59
      $region14: #{stdunet_block.3} parent=11 // pred_check_branch
        %170 = sbr.rel (%p168) target = $region16
      $region15: #{stdunet_block.3} parent=11 // pred_region
        _
      $region16: #{stdunet_block.3} parent=11 // pred_fallthru
        _
      // Predicated region
      $region17: #{stdunet_block.3} parent=11 // pred_check
        %p171 = pneg %p80
      $region18: #{stdunet_block.3} parent=11 // pred_check_branch
        %173 = sbr.rel (%p171) target = $region20
      $region19: #{stdunet_block.3} parent=11 // pred_region
        _
      $region20: #{stdunet_block.3} parent=11 // pred_fallthru
        _
      // Predicated region
      $region21: #{stdunet_block.3} parent=11 // pred_check
        %p174 = pneg %p101
      $region22: #{stdunet_block.3} parent=11 // pred_check_branch
        %176 = sbr.rel (%p174) target = $region24
      $region23: #{stdunet_block.3} parent=11 // pred_region
        _
      $region24: #{stdunet_block.3} parent=11 // pred_fallthru
        _
    $region12: #{stdunet_block.3} parent=5 // pred_fallthru
      _
    %p177 = scmp.lt.s32.totalorder %s12, 2
    // Predicated region
    $region25: #{stdunet_block.3} parent=5 // pred_check
      %p178 = pneg %p177
    $region26: #{stdunet_block.3} parent=5 // pred_check_branch
      %180 = sbr.rel (%p178) target = $region28
    $region27: #{stdunet_block.3} parent=5 // pred_region
      // Predicated region
      $region29: #{stdunet_block.3} parent=27 // pred_check
        %p181 = pneg %p32
      $region30: #{stdunet_block.3} parent=27 // pred_check_branch
        %183 = sbr.rel (%p181) target = $region32
      $region31: #{stdunet_block.3} parent=27 // pred_region
        %p184 = scmp.lt.s32.totalorder %s12, 1
        %s185 = scalar_select %p184, %s12, 1
        %s186 = smul.addr %s185, 2
        %s187 = smul.addr %s186, 4
        %s188 = scalar_lea.vmem %s0, %s187
      $region32: #{stdunet_block.3} parent=27 // pred_fallthru
        _
    $region28: #{stdunet_block.3} parent=5 // pred_fallthru
      _
    %p189 = scmp.le.s32.totalorder 1, %s12
    %p190 = scmp.lt.s32.totalorder %s12, 3
    %p191 = pnand %p189, %p190
    %p192 = pneg %p191
    // Predicated region
    $region33: #{stdunet_block.3} parent=5 // pred_check
      _
    $region34: #{stdunet_block.3} parent=5 // pred_check_branch
      %194 = sbr.rel (%p191) target = $region36
    $region35: #{stdunet_block.3} parent=5 // pred_region
      %s195 = ssub.s32 %s12, 1
      %p196 = scmp.lt.s32.totalorder %s17, 1
      %s197 = scalar_select %p196, %s17, 1
      %s198 = smul.addr %s197, 2
      %s199 = smul.addr %s198, 4
      %s200 = scalar_lea.vmem %s0, %s199
      %p201 = pneg %p38
      %p202 = pneg %p35
      %p203 = pneg %p59
      %p204 = pneg %p56
      %p205 = pneg %p80
      %p206 = pneg %p77
      %p207 = pneg %p101
      %p208 = pneg %p98
      %p209 = pneg %p127
      %p210 = pneg %p124
      %p211 = scmp.lt.s32.totalorder %s17, 1
      %s212 = scalar_select %p211, %s17, 1
      %s213 = smul.addr %s212, 2
      %s214 = smul.addr %s213, 4
      %s215 = scalar_lea.vmem %s4, %s214
      %p216 = pneg %p153
      %p217 = pneg %p150
      %p218 = scmp.lt.s32.totalorder %s17, 1
      %s219 = scalar_select %p218, %s17, 1
      %s220 = smul.addr %s219, 8
      %s221 = scalar_lea.vmem %s5, %s220
      %p222 = scmp.lt.s32.totalorder %s17, 1
      %s223 = scalar_select %p222, %s17, 1
      %s224 = smul.addr %s223, 2
      %s225 = smul.addr %s224, 4
      %s226 = scalar_lea.vmem %s0, %s225
      %p227 = scmp.lt.s32.totalorder %s17, 1
      %s228 = scalar_select %p227, %s17, 1
      %s229 = smul.addr %s228, 2
      %s230 = smul.addr %s229, 4
      %s231 = scalar_lea.vmem %s4, %s230
      %p232 = scmp.lt.s32.totalorder %s17, 1
      %s233 = scalar_select %p232, %s17, 1
      %s234 = smul.addr %s233, 8
      %s235 = scalar_lea.vmem %s5, %s234
      %v237 = vld [vmem:[%s226] sm:$0xf]
      %v238 = vld [vmem:[%s226 + $0x4] sm:$0xf]
      %v239 = vld [vmem:[%s1] sm:$0x1]
      %v240 = vunpack.c.l.bf16 %v237
      %v241 = vunpack.c.l.bf16 %v238
      %v243 = vperm.slane %v239, 0
      %v245 = vmul.f32 %v240, %v243
      %v246 = vmul.f32 %v241, %v243
      %v247 = vld [vmem:[%s2] sm:$0x1]
      %v249 = vperm.slane %v247, 0
      %v251 = vadd.f32 %v245, %v249
      %v252 = vadd.f32 %v246, %v249
      %v253 = vmax.f32 %v251, 0.0
      %v254 = vmax.f32 %v252, 0.0
      %v255 = vlaneseq
      %v256 = vshrl.u32 %v255, 7
      %v257 = vadd.s32 %v256, 8
      %vm258 = vcmp.lt.s32.totalorder %v256, 16
      %vm259 = vcmp.lt.s32.totalorder %v257, 16
      %v260 = vsel %vm258, 1, 0
      %v261 = vsel %vm259, 1, 0
      %vm262 = vcmp.eq.s32.totalorder %v260, 1
      %vm263 = vcmp.eq.s32.totalorder %v261, 1
      %v264 = vsel %vm262, %v253, 0.0
      %v265 = vsel %vm263, %v254, 0.0
      %v266 = vpack.c.bf16 %v264, %v264
      %v267 = vpack.c.bf16 %v265, %v265
      %v270 = vunpack.c.l.b16 %v266
      %v271 = vunpack.c.l.b16 %v267
      %v272 = vpack.c.b16 %v271, %v270
      %v274 = vshrl.u32 %v272, 16
      %v276 = vrot.slane %v274, 7
      %v277 = vshll.u32 %v272, 16
      %v279 = vor.u32 %v276, %v277
      %vm281 = vcmask 1040384
      %vm282 = vsmask.f32 256
      %vm283 = vmand %vm281, %vm282
      %v284 = vsel %vm283, 0, %v279
      %v285 = vrot.slane %v277, 1
      %v286 = vor.u32 %v274, %v285
      %vm288 = vcmask 1047552
      %vm289 = vsmask.f32 7424
      %vm290 = vmand %vm288, %vm289
      %v291 = vsel %vm290, %v286, 0
      %v293 = vld [vmem:[%s3] sm:$0xf]
      %v294 = vld [vmem:[%s3 + $0x4] sm:$0xf]
      %v295 = vld [vmem:[%s3 + $0x8] sm:$0xf]
      %v296 = vld [vmem:[%s3 + $0xc] sm:$0xf]
      %v297 = vld [vmem:[%s3 + $0x10] sm:$0xf]
      %v298 = vld [vmem:[%s3 + $0x14] sm:$0xf]
      %v299 = vld [vmem:[%s3 + $0x18] sm:$0xf]
      %v300 = vld [vmem:[%s3 + $0x1c] sm:$0xf]
      %v301 = vld [vmem:[%s3 + $0x20] sm:$0xf]
      %v302 = vld [vmem:[%s3 + $0x24] sm:$0xf]
      %v303 = vld [vmem:[%s3 + $0x28] sm:$0xf]
      %v304 = vld [vmem:[%s3 + $0x2c] sm:$0xf]
      %v305 = vld [vmem:[%s3 + $0x30] sm:$0xf]
      %v306 = vld [vmem:[%s3 + $0x34] sm:$0xf]
      %v307 = vld [vmem:[%s3 + $0x38] sm:$0xf]
      %v308 = vld [vmem:[%s3 + $0x3c] sm:$0xf]
      %v309 = vld [vmem:[%s3 + $0x40] sm:$0xf]
      %v310 = vld [vmem:[%s3 + $0x44] sm:$0xf]
      %v311 = vld [vmem:[%s3 + $0x48] sm:$0xf]
      %v312 = vld [vmem:[%s3 + $0x4c] sm:$0xf]
      %v313 = vld [vmem:[%s3 + $0x50] sm:$0xf]
      %v314 = vld [vmem:[%s3 + $0x54] sm:$0xf]
      %v315 = vld [vmem:[%s3 + $0x58] sm:$0xf]
      %v316 = vld [vmem:[%s3 + $0x5c] sm:$0xf]
      %v317 = vld [vmem:[%s3 + $0x60] sm:$0xf]
      %v318 = vld [vmem:[%s3 + $0x64] sm:$0xf]
      %v319 = vld [vmem:[%s3 + $0x68] sm:$0xf]
      %v320 = vld [vmem:[%s3 + $0x6c] sm:$0xf]
      %v321 = vld [vmem:[%s3 + $0x70] sm:$0xf]
      %v322 = vld [vmem:[%s3 + $0x74] sm:$0xf]
      %v323 = vld [vmem:[%s3 + $0x78] sm:$0xf]
      %v324 = vld [vmem:[%s3 + $0x7c] sm:$0xf]
      %v325 = vld [vmem:[%s3 + $0x80] sm:$0xf]
      %v326 = vld [vmem:[%s3 + $0x84] sm:$0xf]
      %v327 = vld [vmem:[%s3 + $0x88] sm:$0xf]
      %v328 = vld [vmem:[%s3 + $0x8c] sm:$0xf]
      %v329 = vld [vmem:[%s3 + $0x90] sm:$0xf]
      %v330 = vld [vmem:[%s3 + $0x94] sm:$0xf]
      %v331 = vld [vmem:[%s3 + $0x98] sm:$0xf]
      %v332 = vld [vmem:[%s3 + $0x9c] sm:$0xf]
      %v333 = vld [vmem:[%s3 + $0xa0] sm:$0xf]
      %v334 = vld [vmem:[%s3 + $0xa4] sm:$0xf]
      %v335 = vld [vmem:[%s3 + $0xa8] sm:$0xf]
      %v336 = vld [vmem:[%s3 + $0xac] sm:$0xf]
      %v337 = vld [vmem:[%s3 + $0xb0] sm:$0xf]
      %v338 = vld [vmem:[%s3 + $0xb4] sm:$0xf]
      %v339 = vld [vmem:[%s3 + $0xb8] sm:$0xf]
      %v340 = vld [vmem:[%s3 + $0xbc] sm:$0xf]
      %v389 = vunpack.c.l.b16 %v293
      %v390 = vunpack.c.l.b16 %v294
      %v391 = vunpack.c.l.b16 %v295
      %v392 = vunpack.c.l.b16 %v296
      %v393 = vunpack.c.l.b16 %v297
      %v394 = vunpack.c.l.b16 %v298
      %v395 = vunpack.c.l.b16 %v299
      %v396 = vunpack.c.l.b16 %v300
      %v397 = vunpack.c.l.b16 %v301
      %v398 = vunpack.c.l.b16 %v302
      %v399 = vunpack.c.l.b16 %v303
      %v400 = vunpack.c.l.b16 %v304
      %v401 = vunpack.c.l.b16 %v305
      %v402 = vunpack.c.l.b16 %v306
      %v403 = vunpack.c.l.b16 %v307
      %v404 = vunpack.c.l.b16 %v308
      %v405 = vunpack.c.l.b16 %v309
      %v406 = vunpack.c.l.b16 %v310
      %v407 = vunpack.c.l.b16 %v311
      %v408 = vunpack.c.l.b16 %v312
      %v409 = vunpack.c.l.b16 %v313
      %v410 = vunpack.c.l.b16 %v314
      %v411 = vunpack.c.l.b16 %v315
      %v412 = vunpack.c.l.b16 %v316
      %v413 = vunpack.c.l.b16 %v317
      %v414 = vunpack.c.l.b16 %v318
      %v415 = vunpack.c.l.b16 %v319
      %v416 = vunpack.c.l.b16 %v320
      %v417 = vunpack.c.l.b16 %v321
      %v418 = vunpack.c.l.b16 %v322
      %v419 = vunpack.c.l.b16 %v323
      %v420 = vunpack.c.l.b16 %v324
      %v421 = vunpack.c.l.b16 %v325
      %v422 = vunpack.c.l.b16 %v326
      %v423 = vunpack.c.l.b16 %v327
      %v424 = vunpack.c.l.b16 %v328
      %v425 = vunpack.c.l.b16 %v329
      %v426 = vunpack.c.l.b16 %v330
      %v427 = vunpack.c.l.b16 %v331
      %v428 = vunpack.c.l.b16 %v332
      %v429 = vunpack.c.l.b16 %v333
      %v430 = vunpack.c.l.b16 %v334
      %v431 = vunpack.c.l.b16 %v335
      %v432 = vunpack.c.l.b16 %v336
      %v433 = vunpack.c.l.b16 %v337
      %v434 = vunpack.c.l.b16 %v338
      %v435 = vunpack.c.l.b16 %v339
      %v436 = vunpack.c.l.b16 %v340
      %v437 = vpack.c.b16 %v390, %v389
      %v438 = vpack.c.b16 %v392, %v391
      %v439 = vpack.c.b16 %v394, %v393
      %v440 = vpack.c.b16 %v396, %v395
      %v441 = vpack.c.b16 %v398, %v397
      %v442 = vpack.c.b16 %v400, %v399
      %v443 = vpack.c.b16 %v402, %v401
      %v444 = vpack.c.b16 %v404, %v403
      %v445 = vpack.c.b16 %v406, %v405
      %v446 = vpack.c.b16 %v408, %v407
      %v447 = vpack.c.b16 %v410, %v409
      %v448 = vpack.c.b16 %v412, %v411
      %v449 = vpack.c.b16 %v414, %v413
      %v450 = vpack.c.b16 %v416, %v415
      %v451 = vpack.c.b16 %v418, %v417
      %v452 = vpack.c.b16 %v420, %v419
      %v453 = vpack.c.b16 %v422, %v421
      %v454 = vpack.c.b16 %v424, %v423
      %v455 = vpack.c.b16 %v426, %v425
      %v456 = vpack.c.b16 %v428, %v427
      %v457 = vpack.c.b16 %v430, %v429
      %v458 = vpack.c.b16 %v432, %v431
      %v459 = vpack.c.b16 %v434, %v433
      %v460 = vpack.c.b16 %v436, %v435
      %485 = vmatpush.bf16.msra.mxu0 %v444
      %486 = vmatpush.bf16.msra.mxu0 %v443
      %487 = vmatpush.bf16.msra.mxu0 %v442
      %488 = vmatpush.bf16.msra.mxu0 %v441
      %489 = vmatpush.bf16.msra.mxu0 %v440
      %490 = vmatpush.bf16.msra.mxu0 %v439
      %491 = vmatpush.bf16.msra.mxu0 %v438
      %492 = vmatpush.bf16.msra.mxu0 %v437
      %493 = vmatmul.bf16.gmra.mxu0 %v284
      %v494 = vpop.f32.mrf.mxu0
      %v495 = vadd.f32 0.0, %v494
      %v496 = vpop.f32.mrf.mxu0
      %v497 = vadd.f32 0.0, %v496
      %498 = vdwg.mxu0
      %499 = vmatpush.bf16.msra.mxu0 %v452
      %500 = vmatpush.bf16.msra.mxu0 %v451
      %501 = vmatpush.bf16.msra.mxu0 %v450
      %502 = vmatpush.bf16.msra.mxu0 %v449
      %503 = vmatpush.bf16.msra.mxu0 %v448
      %504 = vmatpush.bf16.msra.mxu0 %v447
      %505 = vmatpush.bf16.msra.mxu0 %v446
      %506 = vmatpush.bf16.msra.mxu0 %v445
      %507 = vmatmul.bf16.gmra.mxu0 %v272
      %v508 = vpop.f32.mrf.mxu0
      %v509 = vadd.f32 %v495, %v508
      %v510 = vpop.f32.mrf.mxu0
      %v511 = vadd.f32 %v497, %v510
      %512 = vdwg.mxu0
      %513 = vmatpush.bf16.msra.mxu0 %v460
      %514 = vmatpush.bf16.msra.mxu0 %v459
      %515 = vmatpush.bf16.msra.mxu0 %v458
      %516 = vmatpush.bf16.msra.mxu0 %v457
      %517 = vmatpush.bf16.msra.mxu0 %v456
      %518 = vmatpush.bf16.msra.mxu0 %v455
      %519 = vmatpush.bf16.msra.mxu0 %v454
      %520 = vmatpush.bf16.msra.mxu0 %v453
      %521 = vmatmul.bf16.gmra.mxu0 %v291
      %v522 = vpop.f32.mrf.mxu0
      %v523 = vadd.f32 %v509, %v522
      %v524 = vpop.f32.mrf.mxu0
      %v525 = vadd.f32 %v511, %v524
      %526 = vdwg.mxu0
      %v527 = vsel %vm262, %v523, 0.0
      %v528 = vsel %vm263, %v525, 0.0
      %v529 = vpack.c.bf16 %v527, %v527
      %v530 = vpack.c.bf16 %v528, %v528
      %v531 = vunpack.c.l.bf16 %v529
      %v532 = vunpack.c.l.bf16 %v530
      %v533 = vadd.f32 %v531, %v532
      %v534 = vrot.slane %v533, 4
      %v535 = vadd.f32 %v533, %v534
      %v536 = vrot.slane %v535, 2
      %v537 = vadd.f32 %v535, %v536
      %v538 = vrot.slane %v537, 1
      %v539 = vadd.f32 %v537, %v538
      %v540 = vmul.f32 %v531, %v531
      %v541 = vmul.f32 %v532, %v532
      %v542 = vadd.f32 %v540, %v541
      %v543 = vrot.slane %v542, 4
      %v544 = vadd.f32 %v542, %v543
      %v545 = vrot.slane %v544, 2
      %v546 = vadd.f32 %v544, %v545
      %v547 = vrot.slane %v546, 1
      %v548 = vadd.f32 %v546, %v547
      %vm549 = vcmask 1040384
      %v550 = vsel %vm549, %v539, %v548
      %vm551 = vcmask 1041408
      %v552 = vsel %vm551, %v550, 0.0
      %553 = vst [vmem:[%s231] sm:$0xf] %v529
      %554 = vst [vmem:[%s231 + $0x4] sm:$0xf] %v530
      %555 = vst [vmem:[%s235] sm:$0xff] %v552
      %p556 = scmp.lt.s32.totalorder %s17, 1
      %s557 = scalar_select %p556, %s17, 1
      %s558 = smul.addr %s557, 2
      %s559 = smul.addr %s558, 4
      %s560 = scalar_lea.vmem %s4, %s559
      %p561 = scmp.lt.s32.totalorder %s17, 1
      %s562 = scalar_select %p561, %s17, 1
      %s563 = smul.addr %s562, 8
      %s564 = scalar_lea.vmem %s5, %s563
      // Predicated region
      $region37: #{stdunet_block.3} parent=35 // pred_check
        %p565 = pneg %p124
      $region38: #{stdunet_block.3} parent=35 // pred_check_branch
        %567 = sbr.rel (%p565) target = $region40
      $region39: #{stdunet_block.3} parent=35 // pred_region
        _
      $region40: #{stdunet_block.3} parent=35 // pred_fallthru
        _
      // Predicated region
      $region41: #{stdunet_block.3} parent=35 // pred_check
        %p568 = pneg %p150
      $region42: #{stdunet_block.3} parent=35 // pred_check_branch
        %570 = sbr.rel (%p568) target = $region44
      $region43: #{stdunet_block.3} parent=35 // pred_region
        _
      $region44: #{stdunet_block.3} parent=35 // pred_fallthru
        _
    $region36: #{stdunet_block.3} parent=5 // pred_fallthru
      _
    %p571 = scmp.le.s32.totalorder 2, %s12
    // Predicated region
    $region45: #{stdunet_block.3} parent=5 // pred_check
      %p572 = pneg %p571
    $region46: #{stdunet_block.3} parent=5 // pred_check_branch
      %574 = sbr.rel (%p572) target = $region48
    $region47: #{stdunet_block.3} parent=5 // pred_region
      %s575 = ssub.s32 %s12, 2
      // Predicated region
      $region49: #{stdunet_block.3} parent=47 // pred_check
        %p576 = pneg %p130
      $region50: #{stdunet_block.3} parent=47 // pred_check_branch
        %578 = sbr.rel (%p576) target = $region52
      $region51: #{stdunet_block.3} parent=47 // pred_region
        %p579 = scmp.lt.s32.totalorder %s18, 1
        %s580 = scalar_select %p579, %s18, 1
        %s581 = smul.addr %s580, 2
        %s582 = smul.addr %s581, 4
        %s583 = scalar_lea.vmem %s4, %s582
      $region52: #{stdunet_block.3} parent=47 // pred_fallthru
        _
      // Predicated region
      $region53: #{stdunet_block.3} parent=47 // pred_check
        %p584 = pneg %p156
      $region54: #{stdunet_block.3} parent=47 // pred_check_branch
        %586 = sbr.rel (%p584) target = $region56
      $region55: #{stdunet_block.3} parent=47 // pred_region
        %p587 = scmp.lt.s32.totalorder %s18, 1
        %s588 = scalar_select %p587, %s18, 1
        %s589 = smul.addr %s588, 8
        %s590 = scalar_lea.vmem %s5, %s589
      $region56: #{stdunet_block.3} parent=47 // pred_fallthru
        _
    $region48: #{stdunet_block.3} parent=5 // pred_fallthru
      _
  $region6: #{stdunet_block.3} parent=0 // loop_footer
    %s16 = sadd.s32 1, %s12
  $region7: #{stdunet_block.3} parent=0 // loop_footer_branch
    %11 = sbr.rel target = $region3
  $region8: #{stdunet_block.3} parent=0 // loop_exit
    _

</llo_original>
